<compile_context>
chip_gen: v7x
topology: tpu7x:2x2x1
jax: 0.10.0
libtpu: 0.0.40
codegen_flags: <defaults>
</compile_context>

<pallas_src>
import functools

import jax
import jax.numpy as jnp
from jax.experimental import pallas as pl
from jax.experimental.pallas import tpu as pltpu

HP = 8  # sublane padding for the hidden widths (5, 4, 3 -> 8)


def _affine_t(w, b, x):
    """(w @ x) + b with w:(M,K), b:(M,1), x:(K,tb); K tiny -> unrolled VPU FMAs."""
    m, k_dim = w.shape
    tb = x.shape[-1]
    acc = jnp.broadcast_to(b, (m, tb))
    for k in range(k_dim):                       # K <= 16, fully unrolled
        acc = acc + w[:, k:k + 1] * x[k:k + 1, :]
    return acc


def _mlp_kernel(x_ref,      # (Kp, tb)     input tile, batch in lanes
                w1_ref,     # (HP, Kp)
                w23_ref,    # (2, HP, HP)  packed fc2 / fc3 weights
                w4_ref,     # (OutP, HP)
                b123_ref,   # (HP, 3)      packed fc1/fc2/fc3 biases (columns)
                b4_ref,     # (OutP, 1)
                o_ref):     # (OutP, tb)
    x = x_ref[...]
    b123 = b123_ref[...]
    h = jnp.tanh(_affine_t(w1_ref[...], b123[:, 0:1], x))
    h = jnp.tanh(_affine_t(w23_ref[0], b123[:, 1:2], h))
    h = jnp.tanh(_affine_t(w23_ref[1], b123[:, 2:3], h))
    z = _affine_t(w4_ref[...], b4_ref[...], h)
    o_ref[...] = jax.nn.sigmoid(z)


def _round_up(n, m):
    return ((n + m - 1) // m) * m


def _pad_to(x, shape):
    pads = [(0, t - s) for s, t in zip(x.shape, shape)]
    return jnp.pad(x, pads)


@functools.partial(jax.jit, static_argnames=("tb_max",))
def mlp_forward(x, params, *, tb_max=2048):
    """x: (B, input_features) float32.  params: dict of (W, b) per layer,
    W shaped (in, out) and b shaped (out,)."""
    B, d_in = x.shape
    (w1, b1), (w2, b2), (w3, b3), (w4, b4) = (
        params["fc1"], params["fc2"], params["fc3"], params["fc4"])
    d_out = w4.shape[1]

    # ---- static shape plumbing (Python ints at trace time) ----------------
    Kp = max(8, _round_up(d_in, 8))        # feature width on the sublane axis
    OutP = max(8, _round_up(d_out, 8))     # output rows on the sublane axis
    tb = max(128, min(_round_up(tb_max, 128), _round_up(B, 128)))  # lane tile
    Bp = _round_up(B, tb)

    f32 = jnp.float32
    # Batch goes to the lane axis: x^T padded to (Kp, Bp).
    xT = _pad_to(x.astype(f32).T, (Kp, Bp))
    # PyTorch-style (out, in) weights for the transposed compute.
    w1t = _pad_to(w1.astype(f32).T, (HP, Kp))
    w23t = jnp.stack([_pad_to(w2.astype(f32).T, (HP, HP)),
                      _pad_to(w3.astype(f32).T, (HP, HP))])
    w4t = _pad_to(w4.astype(f32).T, (OutP, HP))
    b123 = jnp.stack([_pad_to(b1.astype(f32), (HP,)),
                      _pad_to(b2.astype(f32), (HP,)),
                      _pad_to(b3.astype(f32), (HP,))], axis=1)   # (HP, 3)
    b4c = _pad_to(b4.astype(f32), (OutP,)).reshape(OutP, 1)

    out_t = pl.pallas_call(
        _mlp_kernel,
        out_shape=jax.ShapeDtypeStruct((OutP, Bp), f32),
        grid_spec=pltpu.PrefetchScalarGridSpec(
            num_scalar_prefetch=0,
            grid=(Bp // tb,),
            in_specs=[
                pl.BlockSpec((Kp, tb), lambda i: (0, i)),        # x^T tile
                pl.BlockSpec((HP, Kp), lambda i: (0, 0)),        # fc1 weight
                pl.BlockSpec((2, HP, HP), lambda i: (0, 0, 0)),  # fc2+fc3 w
                pl.BlockSpec((OutP, HP), lambda i: (0, 0)),      # fc4 weight
                pl.BlockSpec((HP, 3), lambda i: (0, 0)),         # fc1-3 biases
                pl.BlockSpec((OutP, 1), lambda i: (0, 0)),       # fc4 bias
            ],
            out_specs=pl.BlockSpec((OutP, tb), lambda i: (0, i)),
        ),
        compiler_params=pltpu.CompilerParams(
            dimension_semantics=("parallel",)),
    )(xT, w1t, w23t, w4t, b123, b4c)

    return out_t[:d_out, :B].T


def init_params(key, input_features, output_features):
    """Deterministic init mimicking PyTorch nn.Linear default
    (uniform in [-1/sqrt(fan_in), 1/sqrt(fan_in)]).  Weights stored (in, out)."""
    dims = [input_features, 5, 4, 3, output_features]
    names = ["fc1", "fc2", "fc3", "fc4"]
    params = {}
    for name, fan_in, fan_out in zip(names, dims[:-1], dims[1:]):
        key, kw, kb = jax.random.split(key, 3)
        bound = 1.0 / jnp.sqrt(jnp.float32(fan_in))
        w = jax.random.uniform(kw, (fan_in, fan_out), jnp.float32, -bound, bound)
        b = jax.random.uniform(kb, (fan_out,), jnp.float32, -bound, bound)
        params[name] = (w, b)
    return params


def reference_forward(x, params):
    h = x
    for name in ["fc1", "fc2", "fc3"]:
        w, b = params[name]
        h = jnp.tanh(h @ w + b)
    w, b = params["fc4"]
    return jax.nn.sigmoid(h @ w + b)


if __name__ == "__main__":
    key = jax.random.PRNGKey(0)
    k_x, k_p, k_x2, k_x3, k_p3 = jax.random.split(key, 5)

    # Pima-diabetes-style problem: 8 features -> 1 probability.
    batch, input_features, output_features = 8, 8, 1
    x = jax.random.normal(k_x, (batch, input_features), jnp.float32)
    params = init_params(k_p, input_features, output_features)

    out = mlp_forward(x, params)
    jax.block_until_ready(out)
    ref = reference_forward(x, params)
    assert out.shape == (batch, output_features)
    assert jnp.allclose(out, ref, atol=2e-5, rtol=2e-5)

    # Multi-step grid path: B=160, 128-lane batch tile -> Bp=256, grid=2.
    x2 = jax.random.normal(k_x2, (160, input_features), jnp.float32)
    out2 = mlp_forward(x2, params, tb_max=128)
    jax.block_until_ready(out2)
    ref2 = reference_forward(x2, params)
    assert out2.shape == (160, output_features)
    assert jnp.allclose(out2, ref2, atol=2e-5, rtol=2e-5)

    # Non-multiple-of-8 feature width and a multi-unit output head.
    x3 = jax.random.normal(k_x3, (16, 10), jnp.float32)
    params3 = init_params(k_p3, 10, 2)
    out3 = mlp_forward(x3, params3)
    jax.block_until_ready(out3)
    ref3 = reference_forward(x3, params3)
    assert out3.shape == (16, 2)
    assert jnp.allclose(out3, ref3, atol=2e-5, rtol=2e-5)

    print("KERNEL_OK")
</pallas_src>

<mosaic_0001>
module attributes {stable_mosaic.version = 11 : i64} {
  func.func @_mlp_kernel(%arg0: i32, %arg1: memref<8x128xf32, #tpu.memory_space<vmem>>, %arg2: memref<8x8xf32, #tpu.memory_space<vmem>>, %arg3: memref<2x8x8xf32, #tpu.memory_space<vmem>>, %arg4: memref<8x8xf32, #tpu.memory_space<vmem>>, %arg5: memref<8x3xf32, #tpu.memory_space<vmem>>, %arg6: memref<8x1xf32, #tpu.memory_space<vmem>>, %arg7: memref<8x128xf32, #tpu.memory_space<vmem>>) attributes {dimension_semantics = [#tpu.dimension_semantics<parallel>], iteration_bounds = array<i64: 1>, scalar_prefetch = 0 : i64, scratch_operands = 0 : i64, tpu.core_type = #tpu.core_type<tc>, window_params = [{transform_indices = @transform_0, window_bounds = array<i64: 8, 128>}, {pipeline_mode = #tpu.pipeline_mode<synchronous>, transform_indices = @transform_1, window_bounds = array<i64: 8, 8>}, {pipeline_mode = #tpu.pipeline_mode<synchronous>, transform_indices = @transform_2, window_bounds = array<i64: 2, 8, 8>}, {pipeline_mode = #tpu.pipeline_mode<synchronous>, transform_indices = @transform_3, window_bounds = array<i64: 8, 8>}, {pipeline_mode = #tpu.pipeline_mode<synchronous>, transform_indices = @transform_4, window_bounds = array<i64: 8, 3>}, {pipeline_mode = #tpu.pipeline_mode<synchronous>, transform_indices = @transform_5, window_bounds = array<i64: 8, 1>}, {transform_indices = @transform_6, window_bounds = array<i64: 8, 128>}]} {
    %c0 = arith.constant 0 : index
    %c0_0 = arith.constant 0 : index
    %0 = vector.load %arg1[%c0, %c0_0] : memref<8x128xf32, #tpu.memory_space<vmem>>, vector<8x128xf32>
    %c0_1 = arith.constant 0 : index
    %c0_2 = arith.constant 0 : index
    %1 = vector.load %arg5[%c0_1, %c0_2] : memref<8x3xf32, #tpu.memory_space<vmem>>, vector<8x3xf32>
    %c0_3 = arith.constant 0 : index
    %c0_4 = arith.constant 0 : index
    %2 = vector.load %arg2[%c0_3, %c0_4] : memref<8x8xf32, #tpu.memory_space<vmem>>, vector<8x8xf32>
    %3 = vector.extract_strided_slice %1 {offsets = [0, 0], sizes = [8, 1], strides = [1, 1]} : vector<8x3xf32> to vector<8x1xf32>
    %4 = vector.shape_cast %3 : vector<8x1xf32> to vector<8x1xf32>
    %5 = vector.broadcast %4 : vector<8x1xf32> to vector<8x128xf32>
    %6 = vector.extract_strided_slice %2 {offsets = [0, 0], sizes = [8, 1], strides = [1, 1]} : vector<8x8xf32> to vector<8x1xf32>
    %7 = vector.extract_strided_slice %0 {offsets = [0, 0], sizes = [1, 128], strides = [1, 1]} : vector<8x128xf32> to vector<1x128xf32>
    %8 = vector.broadcast %6 : vector<8x1xf32> to vector<8x128xf32>
    %9 = vector.broadcast %7 : vector<1x128xf32> to vector<8x128xf32>
    %10 = arith.mulf %8, %9 : vector<8x128xf32>
    %11 = arith.addf %5, %10 : vector<8x128xf32>
    %12 = vector.extract_strided_slice %2 {offsets = [0, 1], sizes = [8, 1], strides = [1, 1]} : vector<8x8xf32> to vector<8x1xf32>
    %13 = vector.extract_strided_slice %0 {offsets = [1, 0], sizes = [1, 128], strides = [1, 1]} : vector<8x128xf32> to vector<1x128xf32>
    %14 = vector.broadcast %12 : vector<8x1xf32> to vector<8x128xf32>
    %15 = vector.broadcast %13 : vector<1x128xf32> to vector<8x128xf32>
    %16 = arith.mulf %14, %15 : vector<8x128xf32>
    %17 = arith.addf %11, %16 : vector<8x128xf32>
    %18 = vector.extract_strided_slice %2 {offsets = [0, 2], sizes = [8, 1], strides = [1, 1]} : vector<8x8xf32> to vector<8x1xf32>
    %19 = vector.extract_strided_slice %0 {offsets = [2, 0], sizes = [1, 128], strides = [1, 1]} : vector<8x128xf32> to vector<1x128xf32>
    %20 = vector.broadcast %18 : vector<8x1xf32> to vector<8x128xf32>
    %21 = vector.broadcast %19 : vector<1x128xf32> to vector<8x128xf32>
    %22 = arith.mulf %20, %21 : vector<8x128xf32>
    %23 = arith.addf %17, %22 : vector<8x128xf32>
    %24 = vector.extract_strided_slice %2 {offsets = [0, 3], sizes = [8, 1], strides = [1, 1]} : vector<8x8xf32> to vector<8x1xf32>
    %25 = vector.extract_strided_slice %0 {offsets = [3, 0], sizes = [1, 128], strides = [1, 1]} : vector<8x128xf32> to vector<1x128xf32>
    %26 = vector.broadcast %24 : vector<8x1xf32> to vector<8x128xf32>
    %27 = vector.broadcast %25 : vector<1x128xf32> to vector<8x128xf32>
    %28 = arith.mulf %26, %27 : vector<8x128xf32>
    %29 = arith.addf %23, %28 : vector<8x128xf32>
    %30 = vector.extract_strided_slice %2 {offsets = [0, 4], sizes = [8, 1], strides = [1, 1]} : vector<8x8xf32> to vector<8x1xf32>
    %31 = vector.extract_strided_slice %0 {offsets = [4, 0], sizes = [1, 128], strides = [1, 1]} : vector<8x128xf32> to vector<1x128xf32>
    %32 = vector.broadcast %30 : vector<8x1xf32> to vector<8x128xf32>
    %33 = vector.broadcast %31 : vector<1x128xf32> to vector<8x128xf32>
    %34 = arith.mulf %32, %33 : vector<8x128xf32>
    %35 = arith.addf %29, %34 : vector<8x128xf32>
    %36 = vector.extract_strided_slice %2 {offsets = [0, 5], sizes = [8, 1], strides = [1, 1]} : vector<8x8xf32> to vector<8x1xf32>
    %37 = vector.extract_strided_slice %0 {offsets = [5, 0], sizes = [1, 128], strides = [1, 1]} : vector<8x128xf32> to vector<1x128xf32>
    %38 = vector.broadcast %36 : vector<8x1xf32> to vector<8x128xf32>
    %39 = vector.broadcast %37 : vector<1x128xf32> to vector<8x128xf32>
    %40 = arith.mulf %38, %39 : vector<8x128xf32>
    %41 = arith.addf %35, %40 : vector<8x128xf32>
    %42 = vector.extract_strided_slice %2 {offsets = [0, 6], sizes = [8, 1], strides = [1, 1]} : vector<8x8xf32> to vector<8x1xf32>
    %43 = vector.extract_strided_slice %0 {offsets = [6, 0], sizes = [1, 128], strides = [1, 1]} : vector<8x128xf32> to vector<1x128xf32>
    %44 = vector.broadcast %42 : vector<8x1xf32> to vector<8x128xf32>
    %45 = vector.broadcast %43 : vector<1x128xf32> to vector<8x128xf32>
    %46 = arith.mulf %44, %45 : vector<8x128xf32>
    %47 = arith.addf %41, %46 : vector<8x128xf32>
    %48 = vector.extract_strided_slice %2 {offsets = [0, 7], sizes = [8, 1], strides = [1, 1]} : vector<8x8xf32> to vector<8x1xf32>
    %49 = vector.extract_strided_slice %0 {offsets = [7, 0], sizes = [1, 128], strides = [1, 1]} : vector<8x128xf32> to vector<1x128xf32>
    %50 = vector.broadcast %48 : vector<8x1xf32> to vector<8x128xf32>
    %51 = vector.broadcast %49 : vector<1x128xf32> to vector<8x128xf32>
    %52 = arith.mulf %50, %51 : vector<8x128xf32>
    %53 = arith.addf %47, %52 : vector<8x128xf32>
    %54 = math.tanh %53 : vector<8x128xf32>
    %c0_5 = arith.constant 0 : index
    %c0_6 = arith.constant 0 : index
    %c0_7 = arith.constant 0 : index
    %55 = vector.load %arg3[%c0_5, %c0_6, %c0_7] : memref<2x8x8xf32, #tpu.memory_space<vmem>>, vector<1x8x8xf32>
    %56 = vector.shape_cast %55 : vector<1x8x8xf32> to vector<8x8xf32>
    %57 = vector.extract_strided_slice %1 {offsets = [0, 1], sizes = [8, 1], strides = [1, 1]} : vector<8x3xf32> to vector<8x1xf32>
    %58 = vector.shape_cast %57 : vector<8x1xf32> to vector<8x1xf32>
    %59 = vector.broadcast %58 : vector<8x1xf32> to vector<8x128xf32>
    %60 = vector.extract_strided_slice %56 {offsets = [0, 0], sizes = [8, 1], strides = [1, 1]} : vector<8x8xf32> to vector<8x1xf32>
    %61 = vector.extract_strided_slice %54 {offsets = [0, 0], sizes = [1, 128], strides = [1, 1]} : vector<8x128xf32> to vector<1x128xf32>
    %62 = vector.broadcast %60 : vector<8x1xf32> to vector<8x128xf32>
    %63 = vector.broadcast %61 : vector<1x128xf32> to vector<8x128xf32>
    %64 = arith.mulf %62, %63 : vector<8x128xf32>
    %65 = arith.addf %59, %64 : vector<8x128xf32>
    %66 = vector.extract_strided_slice %56 {offsets = [0, 1], sizes = [8, 1], strides = [1, 1]} : vector<8x8xf32> to vector<8x1xf32>
    %67 = vector.extract_strided_slice %54 {offsets = [1, 0], sizes = [1, 128], strides = [1, 1]} : vector<8x128xf32> to vector<1x128xf32>
    %68 = vector.broadcast %66 : vector<8x1xf32> to vector<8x128xf32>
    %69 = vector.broadcast %67 : vector<1x128xf32> to vector<8x128xf32>
    %70 = arith.mulf %68, %69 : vector<8x128xf32>
    %71 = arith.addf %65, %70 : vector<8x128xf32>
    %72 = vector.extract_strided_slice %56 {offsets = [0, 2], sizes = [8, 1], strides = [1, 1]} : vector<8x8xf32> to vector<8x1xf32>
    %73 = vector.extract_strided_slice %54 {offsets = [2, 0], sizes = [1, 128], strides = [1, 1]} : vector<8x128xf32> to vector<1x128xf32>
    %74 = vector.broadcast %72 : vector<8x1xf32> to vector<8x128xf32>
    %75 = vector.broadcast %73 : vector<1x128xf32> to vector<8x128xf32>
    %76 = arith.mulf %74, %75 : vector<8x128xf32>
    %77 = arith.addf %71, %76 : vector<8x128xf32>
    %78 = vector.extract_strided_slice %56 {offsets = [0, 3], sizes = [8, 1], strides = [1, 1]} : vector<8x8xf32> to vector<8x1xf32>
    %79 = vector.extract_strided_slice %54 {offsets = [3, 0], sizes = [1, 128], strides = [1, 1]} : vector<8x128xf32> to vector<1x128xf32>
    %80 = vector.broadcast %78 : vector<8x1xf32> to vector<8x128xf32>
    %81 = vector.broadcast %79 : vector<1x128xf32> to vector<8x128xf32>
    %82 = arith.mulf %80, %81 : vector<8x128xf32>
    %83 = arith.addf %77, %82 : vector<8x128xf32>
    %84 = vector.extract_strided_slice %56 {offsets = [0, 4], sizes = [8, 1], strides = [1, 1]} : vector<8x8xf32> to vector<8x1xf32>
    %85 = vector.extract_strided_slice %54 {offsets = [4, 0], sizes = [1, 128], strides = [1, 1]} : vector<8x128xf32> to vector<1x128xf32>
    %86 = vector.broadcast %84 : vector<8x1xf32> to vector<8x128xf32>
    %87 = vector.broadcast %85 : vector<1x128xf32> to vector<8x128xf32>
    %88 = arith.mulf %86, %87 : vector<8x128xf32>
    %89 = arith.addf %83, %88 : vector<8x128xf32>
    %90 = vector.extract_strided_slice %56 {offsets = [0, 5], sizes = [8, 1], strides = [1, 1]} : vector<8x8xf32> to vector<8x1xf32>
    %91 = vector.extract_strided_slice %54 {offsets = [5, 0], sizes = [1, 128], strides = [1, 1]} : vector<8x128xf32> to vector<1x128xf32>
    %92 = vector.broadcast %90 : vector<8x1xf32> to vector<8x128xf32>
    %93 = vector.broadcast %91 : vector<1x128xf32> to vector<8x128xf32>
    %94 = arith.mulf %92, %93 : vector<8x128xf32>
    %95 = arith.addf %89, %94 : vector<8x128xf32>
    %96 = vector.extract_strided_slice %56 {offsets = [0, 6], sizes = [8, 1], strides = [1, 1]} : vector<8x8xf32> to vector<8x1xf32>
    %97 = vector.extract_strided_slice %54 {offsets = [6, 0], sizes = [1, 128], strides = [1, 1]} : vector<8x128xf32> to vector<1x128xf32>
    %98 = vector.broadcast %96 : vector<8x1xf32> to vector<8x128xf32>
    %99 = vector.broadcast %97 : vector<1x128xf32> to vector<8x128xf32>
    %100 = arith.mulf %98, %99 : vector<8x128xf32>
    %101 = arith.addf %95, %100 : vector<8x128xf32>
    %102 = vector.extract_strided_slice %56 {offsets = [0, 7], sizes = [8, 1], strides = [1, 1]} : vector<8x8xf32> to vector<8x1xf32>
    %103 = vector.extract_strided_slice %54 {offsets = [7, 0], sizes = [1, 128], strides = [1, 1]} : vector<8x128xf32> to vector<1x128xf32>
    %104 = vector.broadcast %102 : vector<8x1xf32> to vector<8x128xf32>
    %105 = vector.broadcast %103 : vector<1x128xf32> to vector<8x128xf32>
    %106 = arith.mulf %104, %105 : vector<8x128xf32>
    %107 = arith.addf %101, %106 : vector<8x128xf32>
    %108 = math.tanh %107 : vector<8x128xf32>
    %c1 = arith.constant 1 : index
    %c0_8 = arith.constant 0 : index
    %c0_9 = arith.constant 0 : index
    %109 = vector.load %arg3[%c1, %c0_8, %c0_9] : memref<2x8x8xf32, #tpu.memory_space<vmem>>, vector<1x8x8xf32>
    %110 = vector.shape_cast %109 : vector<1x8x8xf32> to vector<8x8xf32>
    %111 = vector.extract_strided_slice %1 {offsets = [0, 2], sizes = [8, 1], strides = [1, 1]} : vector<8x3xf32> to vector<8x1xf32>
    %112 = vector.shape_cast %111 : vector<8x1xf32> to vector<8x1xf32>
    %113 = vector.broadcast %112 : vector<8x1xf32> to vector<8x128xf32>
    %114 = vector.extract_strided_slice %110 {offsets = [0, 0], sizes = [8, 1], strides = [1, 1]} : vector<8x8xf32> to vector<8x1xf32>
    %115 = vector.extract_strided_slice %108 {offsets = [0, 0], sizes = [1, 128], strides = [1, 1]} : vector<8x128xf32> to vector<1x128xf32>
    %116 = vector.broadcast %114 : vector<8x1xf32> to vector<8x128xf32>
    %117 = vector.broadcast %115 : vector<1x128xf32> to vector<8x128xf32>
    %118 = arith.mulf %116, %117 : vector<8x128xf32>
    %119 = arith.addf %113, %118 : vector<8x128xf32>
    %120 = vector.extract_strided_slice %110 {offsets = [0, 1], sizes = [8, 1], strides = [1, 1]} : vector<8x8xf32> to vector<8x1xf32>
    %121 = vector.extract_strided_slice %108 {offsets = [1, 0], sizes = [1, 128], strides = [1, 1]} : vector<8x128xf32> to vector<1x128xf32>
    %122 = vector.broadcast %120 : vector<8x1xf32> to vector<8x128xf32>
    %123 = vector.broadcast %121 : vector<1x128xf32> to vector<8x128xf32>
    %124 = arith.mulf %122, %123 : vector<8x128xf32>
    %125 = arith.addf %119, %124 : vector<8x128xf32>
    %126 = vector.extract_strided_slice %110 {offsets = [0, 2], sizes = [8, 1], strides = [1, 1]} : vector<8x8xf32> to vector<8x1xf32>
    %127 = vector.extract_strided_slice %108 {offsets = [2, 0], sizes = [1, 128], strides = [1, 1]} : vector<8x128xf32> to vector<1x128xf32>
    %128 = vector.broadcast %126 : vector<8x1xf32> to vector<8x128xf32>
    %129 = vector.broadcast %127 : vector<1x128xf32> to vector<8x128xf32>
    %130 = arith.mulf %128, %129 : vector<8x128xf32>
    %131 = arith.addf %125, %130 : vector<8x128xf32>
    %132 = vector.extract_strided_slice %110 {offsets = [0, 3], sizes = [8, 1], strides = [1, 1]} : vector<8x8xf32> to vector<8x1xf32>
    %133 = vector.extract_strided_slice %108 {offsets = [3, 0], sizes = [1, 128], strides = [1, 1]} : vector<8x128xf32> to vector<1x128xf32>
    %134 = vector.broadcast %132 : vector<8x1xf32> to vector<8x128xf32>
    %135 = vector.broadcast %133 : vector<1x128xf32> to vector<8x128xf32>
    %136 = arith.mulf %134, %135 : vector<8x128xf32>
    %137 = arith.addf %131, %136 : vector<8x128xf32>
    %138 = vector.extract_strided_slice %110 {offsets = [0, 4], sizes = [8, 1], strides = [1, 1]} : vector<8x8xf32> to vector<8x1xf32>
    %139 = vector.extract_strided_slice %108 {offsets = [4, 0], sizes = [1, 128], strides = [1, 1]} : vector<8x128xf32> to vector<1x128xf32>
    %140 = vector.broadcast %138 : vector<8x1xf32> to vector<8x128xf32>
    %141 = vector.broadcast %139 : vector<1x128xf32> to vector<8x128xf32>
    %142 = arith.mulf %140, %141 : vector<8x128xf32>
    %143 = arith.addf %137, %142 : vector<8x128xf32>
    %144 = vector.extract_strided_slice %110 {offsets = [0, 5], sizes = [8, 1], strides = [1, 1]} : vector<8x8xf32> to vector<8x1xf32>
    %145 = vector.extract_strided_slice %108 {offsets = [5, 0], sizes = [1, 128], strides = [1, 1]} : vector<8x128xf32> to vector<1x128xf32>
    %146 = vector.broadcast %144 : vector<8x1xf32> to vector<8x128xf32>
    %147 = vector.broadcast %145 : vector<1x128xf32> to vector<8x128xf32>
    %148 = arith.mulf %146, %147 : vector<8x128xf32>
    %149 = arith.addf %143, %148 : vector<8x128xf32>
    %150 = vector.extract_strided_slice %110 {offsets = [0, 6], sizes = [8, 1], strides = [1, 1]} : vector<8x8xf32> to vector<8x1xf32>
    %151 = vector.extract_strided_slice %108 {offsets = [6, 0], sizes = [1, 128], strides = [1, 1]} : vector<8x128xf32> to vector<1x128xf32>
    %152 = vector.broadcast %150 : vector<8x1xf32> to vector<8x128xf32>
    %153 = vector.broadcast %151 : vector<1x128xf32> to vector<8x128xf32>
    %154 = arith.mulf %152, %153 : vector<8x128xf32>
    %155 = arith.addf %149, %154 : vector<8x128xf32>
    %156 = vector.extract_strided_slice %110 {offsets = [0, 7], sizes = [8, 1], strides = [1, 1]} : vector<8x8xf32> to vector<8x1xf32>
    %157 = vector.extract_strided_slice %108 {offsets = [7, 0], sizes = [1, 128], strides = [1, 1]} : vector<8x128xf32> to vector<1x128xf32>
    %158 = vector.broadcast %156 : vector<8x1xf32> to vector<8x128xf32>
    %159 = vector.broadcast %157 : vector<1x128xf32> to vector<8x128xf32>
    %160 = arith.mulf %158, %159 : vector<8x128xf32>
    %161 = arith.addf %155, %160 : vector<8x128xf32>
    %162 = math.tanh %161 : vector<8x128xf32>
    %c0_10 = arith.constant 0 : index
    %c0_11 = arith.constant 0 : index
    %163 = vector.load %arg4[%c0_10, %c0_11] : memref<8x8xf32, #tpu.memory_space<vmem>>, vector<8x8xf32>
    %c0_12 = arith.constant 0 : index
    %c0_13 = arith.constant 0 : index
    %164 = vector.load %arg6[%c0_12, %c0_13] : memref<8x1xf32, #tpu.memory_space<vmem>>, vector<8x1xf32>
    %165 = vector.shape_cast %164 : vector<8x1xf32> to vector<8x1xf32>
    %166 = vector.broadcast %165 : vector<8x1xf32> to vector<8x128xf32>
    %167 = vector.extract_strided_slice %163 {offsets = [0, 0], sizes = [8, 1], strides = [1, 1]} : vector<8x8xf32> to vector<8x1xf32>
    %168 = vector.extract_strided_slice %162 {offsets = [0, 0], sizes = [1, 128], strides = [1, 1]} : vector<8x128xf32> to vector<1x128xf32>
    %169 = vector.broadcast %167 : vector<8x1xf32> to vector<8x128xf32>
    %170 = vector.broadcast %168 : vector<1x128xf32> to vector<8x128xf32>
    %171 = arith.mulf %169, %170 : vector<8x128xf32>
    %172 = arith.addf %166, %171 : vector<8x128xf32>
    %173 = vector.extract_strided_slice %163 {offsets = [0, 1], sizes = [8, 1], strides = [1, 1]} : vector<8x8xf32> to vector<8x1xf32>
    %174 = vector.extract_strided_slice %162 {offsets = [1, 0], sizes = [1, 128], strides = [1, 1]} : vector<8x128xf32> to vector<1x128xf32>
    %175 = vector.broadcast %173 : vector<8x1xf32> to vector<8x128xf32>
    %176 = vector.broadcast %174 : vector<1x128xf32> to vector<8x128xf32>
    %177 = arith.mulf %175, %176 : vector<8x128xf32>
    %178 = arith.addf %172, %177 : vector<8x128xf32>
    %179 = vector.extract_strided_slice %163 {offsets = [0, 2], sizes = [8, 1], strides = [1, 1]} : vector<8x8xf32> to vector<8x1xf32>
    %180 = vector.extract_strided_slice %162 {offsets = [2, 0], sizes = [1, 128], strides = [1, 1]} : vector<8x128xf32> to vector<1x128xf32>
    %181 = vector.broadcast %179 : vector<8x1xf32> to vector<8x128xf32>
    %182 = vector.broadcast %180 : vector<1x128xf32> to vector<8x128xf32>
    %183 = arith.mulf %181, %182 : vector<8x128xf32>
    %184 = arith.addf %178, %183 : vector<8x128xf32>
    %185 = vector.extract_strided_slice %163 {offsets = [0, 3], sizes = [8, 1], strides = [1, 1]} : vector<8x8xf32> to vector<8x1xf32>
    %186 = vector.extract_strided_slice %162 {offsets = [3, 0], sizes = [1, 128], strides = [1, 1]} : vector<8x128xf32> to vector<1x128xf32>
    %187 = vector.broadcast %185 : vector<8x1xf32> to vector<8x128xf32>
    %188 = vector.broadcast %186 : vector<1x128xf32> to vector<8x128xf32>
    %189 = arith.mulf %187, %188 : vector<8x128xf32>
    %190 = arith.addf %184, %189 : vector<8x128xf32>
    %191 = vector.extract_strided_slice %163 {offsets = [0, 4], sizes = [8, 1], strides = [1, 1]} : vector<8x8xf32> to vector<8x1xf32>
    %192 = vector.extract_strided_slice %162 {offsets = [4, 0], sizes = [1, 128], strides = [1, 1]} : vector<8x128xf32> to vector<1x128xf32>
    %193 = vector.broadcast %191 : vector<8x1xf32> to vector<8x128xf32>
    %194 = vector.broadcast %192 : vector<1x128xf32> to vector<8x128xf32>
    %195 = arith.mulf %193, %194 : vector<8x128xf32>
    %196 = arith.addf %190, %195 : vector<8x128xf32>
    %197 = vector.extract_strided_slice %163 {offsets = [0, 5], sizes = [8, 1], strides = [1, 1]} : vector<8x8xf32> to vector<8x1xf32>
    %198 = vector.extract_strided_slice %162 {offsets = [5, 0], sizes = [1, 128], strides = [1, 1]} : vector<8x128xf32> to vector<1x128xf32>
    %199 = vector.broadcast %197 : vector<8x1xf32> to vector<8x128xf32>
    %200 = vector.broadcast %198 : vector<1x128xf32> to vector<8x128xf32>
    %201 = arith.mulf %199, %200 : vector<8x128xf32>
    %202 = arith.addf %196, %201 : vector<8x128xf32>
    %203 = vector.extract_strided_slice %163 {offsets = [0, 6], sizes = [8, 1], strides = [1, 1]} : vector<8x8xf32> to vector<8x1xf32>
    %204 = vector.extract_strided_slice %162 {offsets = [6, 0], sizes = [1, 128], strides = [1, 1]} : vector<8x128xf32> to vector<1x128xf32>
    %205 = vector.broadcast %203 : vector<8x1xf32> to vector<8x128xf32>
    %206 = vector.broadcast %204 : vector<1x128xf32> to vector<8x128xf32>
    %207 = arith.mulf %205, %206 : vector<8x128xf32>
    %208 = arith.addf %202, %207 : vector<8x128xf32>
    %209 = vector.extract_strided_slice %163 {offsets = [0, 7], sizes = [8, 1], strides = [1, 1]} : vector<8x8xf32> to vector<8x1xf32>
    %210 = vector.extract_strided_slice %162 {offsets = [7, 0], sizes = [1, 128], strides = [1, 1]} : vector<8x128xf32> to vector<1x128xf32>
    %211 = vector.broadcast %209 : vector<8x1xf32> to vector<8x128xf32>
    %212 = vector.broadcast %210 : vector<1x128xf32> to vector<8x128xf32>
    %213 = arith.mulf %211, %212 : vector<8x128xf32>
    %214 = arith.addf %208, %213 : vector<8x128xf32>
    %215 = arith.negf %214 : vector<8x128xf32>
    %216 = math.exp %215 : vector<8x128xf32>
    %cst = arith.constant 1.000000e+00 : f32
    %217 = vector.broadcast %cst : f32 to vector<8x128xf32>
    %218 = arith.addf %217, %216 : vector<8x128xf32>
    %219 = arith.divf %217, %218 : vector<8x128xf32>
    %c0_14 = arith.constant 0 : index
    %c0_15 = arith.constant 0 : index
    %220 = vector.load %arg7[%c0_14, %c0_15] : memref<8x128xf32, #tpu.memory_space<vmem>>, vector<8x128xf32>
    tpu.vector_store %arg7[%c0_14, %c0_15], %219 {strides = array<i32>} : memref<8x128xf32, #tpu.memory_space<vmem>>, vector<8x128xf32>,
    return
  }
  func.func @transform_0(%arg0: i32) -> (i32, i32) {
    %c0_i32 = arith.constant 0 : i32
    %c0_i32_0 = arith.constant 0 : i32
    return %c0_i32, %arg0 : i32, i32
  }
  func.func @transform_1(%arg0: i32) -> (i32, i32) {
    %c0_i32 = arith.constant 0 : i32
    %c0_i32_0 = arith.constant 0 : i32
    %c0_i32_1 = arith.constant 0 : i32
    return %c0_i32, %c0_i32_0 : i32, i32
  }
  func.func @transform_2(%arg0: i32) -> (i32, i32, i32) {
    %c0_i32 = arith.constant 0 : i32
    %c0_i32_0 = arith.constant 0 : i32
    %c0_i32_1 = arith.constant 0 : i32
    %c0_i32_2 = arith.constant 0 : i32
    return %c0_i32, %c0_i32_0, %c0_i32_1 : i32, i32, i32
  }
  func.func @transform_3(%arg0: i32) -> (i32, i32) {
    %c0_i32 = arith.constant 0 : i32
    %c0_i32_0 = arith.constant 0 : i32
    %c0_i32_1 = arith.constant 0 : i32
    return %c0_i32, %c0_i32_0 : i32, i32
  }
  func.func @transform_4(%arg0: i32) -> (i32, i32) {
    %c0_i32 = arith.constant 0 : i32
    %c0_i32_0 = arith.constant 0 : i32
    %c0_i32_1 = arith.constant 0 : i32
    return %c0_i32, %c0_i32_0 : i32, i32
  }
  func.func @transform_5(%arg0: i32) -> (i32, i32) {
    %c0_i32 = arith.constant 0 : i32
    %c0_i32_0 = arith.constant 0 : i32
    %c0_i32_1 = arith.constant 0 : i32
    return %c0_i32, %c0_i32_0 : i32, i32
  }
  func.func @transform_6(%arg0: i32) -> (i32, i32) {
    %c0_i32 = arith.constant 0 : i32
    %c0_i32_0 = arith.constant 0 : i32
    return %c0_i32, %arg0 : i32, i32
  }
}

</mosaic_0001>

<llo_original>
// kernel: mlp_forward.1
$region0: #{mlp_forward.1}
  #allocation0 [shape = 'u32[]', space=smem, size = 0x4, offset = 0x4, fixed_abs, tag = 'smem constant byte address 0x4 - core index']
  #allocation1 [shape = 'u32[144,128]{1,0:T(1,128)}', space=vmem, size = 0x12000, scoped, tag = 'internal scratch']
  %s0 = inlined_call_operand.vmem [shape: f32[8,128], index: 0, kind: input, shape index: {}]
  %s1 = inlined_call_operand.vmem [shape: f32[8,8], index: 1, kind: input, shape index: {}]
  %s2 = inlined_call_operand.vmem [shape: f32[2,8,8], index: 2, kind: input, shape index: {}]
  %s3 = inlined_call_operand.vmem [shape: f32[8,8], index: 3, kind: input, shape index: {}]
  %s4 = inlined_call_operand.vmem [shape: f32[8,3], index: 4, kind: input, shape index: {}]
  %s5 = inlined_call_operand.vmem [shape: f32[8,1], index: 5, kind: input, shape index: {}]
  %s6 = inlined_call_operand.vmem [shape: f32[8,128], index: 6, kind: output, shape index: {}]
  %s7 = sld [smem:[#allocation0]]
  $region34: #{mlp_forward.1} parent=0
    _
  %s9 = ssub.s32 1, %s7
  %s10 = scalar_select 0, %s9, %s7
  // Predicated region
  $region2: #{mlp_forward.1} parent=0 // pred_check
    _
  $region3: #{mlp_forward.1} parent=0 // pred_check_branch
    %12 = sbr.rel (0) target = $region5
  $region4: #{mlp_forward.1} parent=0 // pred_region
    _
  $region5: #{mlp_forward.1} parent=0 // pred_fallthru
    _
  // Predicated region
  $region6: #{mlp_forward.1} parent=0 // pred_check
    _
  $region7: #{mlp_forward.1} parent=0 // pred_check_branch
    %14 = sbr.rel (0) target = $region9
  $region8: #{mlp_forward.1} parent=0 // pred_region
    _
  $region9: #{mlp_forward.1} parent=0 // pred_fallthru
    _
  // Predicated region
  $region10: #{mlp_forward.1} parent=0 // pred_check
    _
  $region11: #{mlp_forward.1} parent=0 // pred_check_branch
    %16 = sbr.rel (0) target = $region13
  $region12: #{mlp_forward.1} parent=0 // pred_region
    _
  $region13: #{mlp_forward.1} parent=0 // pred_fallthru
    _
  // Predicated region
  $region14: #{mlp_forward.1} parent=0 // pred_check
    _
  $region15: #{mlp_forward.1} parent=0 // pred_check_branch
    %18 = sbr.rel (0) target = $region17
  $region16: #{mlp_forward.1} parent=0 // pred_region
    _
  $region17: #{mlp_forward.1} parent=0 // pred_fallthru
    _
  // Predicated region
  $region18: #{mlp_forward.1} parent=0 // pred_check
    _
  $region19: #{mlp_forward.1} parent=0 // pred_check_branch
    %20 = sbr.rel (0) target = $region21
  $region20: #{mlp_forward.1} parent=0 // pred_region
    _
  $region21: #{mlp_forward.1} parent=0 // pred_fallthru
    _
  // Predicated region
  $region22: #{mlp_forward.1} parent=0 // pred_check
    _
  $region23: #{mlp_forward.1} parent=0 // pred_check_branch
    %22 = sbr.rel (0) target = $region25
  $region24: #{mlp_forward.1} parent=0 // pred_region
    _
  $region25: #{mlp_forward.1} parent=0 // pred_fallthru
    _
  %v23 = vld [vmem:[%s0] sm:$0xff]
  %v24 = vld [vmem:[%s4] sm:$0xff]
  %v25 = vld [vmem:[%s1] sm:$0xff]
  %27 = vset.pattern.permute.xlu0 0
  %28 = vperm.xlu0 %27, %v24
  %v29 = vpop.permute.xlu0 %28
  %32 = vset.pattern.permute.xlu0 0
  %33 = vperm.xlu0 %32, %v25
  %v34 = vpop.permute.xlu0 %33
  %v36 = vlaneseq
  %v37 = vshrl.u32 %v36, 7
  %v38 = vsub.s32 0, %v37
  %v39 = vrot.slane %v23, %v38
  %v40 = vmul.f32 %v34, %v39
  %v41 = vadd.f32 %v29, %v40
  %42 = vset.pattern.permute.xlu0 1
  %43 = vperm.xlu0 %42, %v25
  %v44 = vpop.permute.xlu0 %43
  %v46 = vlaneseq
  %v47 = vshrl.u32 %v46, 7
  %v48 = vsub.s32 1, %v47
  %v49 = vrot.slane %v23, %v48
  %v50 = vmul.f32 %v44, %v49
  %v51 = vadd.f32 %v41, %v50
  %52 = vset.pattern.permute.xlu0 2
  %53 = vperm.xlu0 %52, %v25
  %v54 = vpop.permute.xlu0 %53
  %v56 = vlaneseq
  %v57 = vshrl.u32 %v56, 7
  %v58 = vsub.s32 2, %v57
  %v59 = vrot.slane %v23, %v58
  %v60 = vmul.f32 %v54, %v59
  %v61 = vadd.f32 %v51, %v60
  %62 = vset.pattern.permute.xlu0 3
  %63 = vperm.xlu0 %62, %v25
  %v64 = vpop.permute.xlu0 %63
  %v66 = vlaneseq
  %v67 = vshrl.u32 %v66, 7
  %v68 = vsub.s32 3, %v67
  %v69 = vrot.slane %v23, %v68
  %v70 = vmul.f32 %v64, %v69
  %v71 = vadd.f32 %v61, %v70
  %72 = vset.pattern.permute.xlu0 4
  %73 = vperm.xlu0 %72, %v25
  %v74 = vpop.permute.xlu0 %73
  %v76 = vlaneseq
  %v77 = vshrl.u32 %v76, 7
  %v78 = vsub.s32 4, %v77
  %v79 = vrot.slane %v23, %v78
  %v80 = vmul.f32 %v74, %v79
  %v81 = vadd.f32 %v71, %v80
  %82 = vset.pattern.permute.xlu0 5
  %83 = vperm.xlu0 %82, %v25
  %v84 = vpop.permute.xlu0 %83
  %v86 = vlaneseq
  %v87 = vshrl.u32 %v86, 7
  %v88 = vsub.s32 5, %v87
  %v89 = vrot.slane %v23, %v88
  %v90 = vmul.f32 %v84, %v89
  %v91 = vadd.f32 %v81, %v90
  %92 = vset.pattern.permute.xlu0 6
  %93 = vperm.xlu0 %92, %v25
  %v94 = vpop.permute.xlu0 %93
  %v96 = vlaneseq
  %v97 = vshrl.u32 %v96, 7
  %v98 = vsub.s32 6, %v97
  %v99 = vrot.slane %v23, %v98
  %v100 = vmul.f32 %v94, %v99
  %v101 = vadd.f32 %v91, %v100
  %102 = vset.pattern.permute.xlu0 7
  %103 = vperm.xlu0 %102, %v25
  %v104 = vpop.permute.xlu0 %103
  %v106 = vlaneseq
  %v107 = vshrl.u32 %v106, 7
  %v108 = vsub.s32 7, %v107
  %v109 = vrot.slane %v23, %v108
  %v110 = vmul.f32 %v104, %v109
  %v111 = vadd.f32 %v101, %v110
  %v112 = vtanh.pop %v111
  %v113 = vld [vmem:[%s2] sm:$0xff]
  %114 = vset.pattern.permute.xlu0 1
  %115 = vperm.xlu0 %114, %v24
  %v116 = vpop.permute.xlu0 %115
  %119 = vset.pattern.permute.xlu0 0
  %120 = vperm.xlu0 %119, %v113
  %v121 = vpop.permute.xlu0 %120
  %v123 = vlaneseq
  %v124 = vshrl.u32 %v123, 7
  %v125 = vsub.s32 0, %v124
  %v126 = vrot.slane %v112, %v125
  %v127 = vmul.f32 %v121, %v126
  %v128 = vadd.f32 %v116, %v127
  %129 = vset.pattern.permute.xlu0 1
  %130 = vperm.xlu0 %129, %v113
  %v131 = vpop.permute.xlu0 %130
  %v133 = vlaneseq
  %v134 = vshrl.u32 %v133, 7
  %v135 = vsub.s32 1, %v134
  %v136 = vrot.slane %v112, %v135
  %v137 = vmul.f32 %v131, %v136
  %v138 = vadd.f32 %v128, %v137
  %139 = vset.pattern.permute.xlu0 2
  %140 = vperm.xlu0 %139, %v113
  %v141 = vpop.permute.xlu0 %140
  %v143 = vlaneseq
  %v144 = vshrl.u32 %v143, 7
  %v145 = vsub.s32 2, %v144
  %v146 = vrot.slane %v112, %v145
  %v147 = vmul.f32 %v141, %v146
  %v148 = vadd.f32 %v138, %v147
  %149 = vset.pattern.permute.xlu0 3
  %150 = vperm.xlu0 %149, %v113
  %v151 = vpop.permute.xlu0 %150
  %v153 = vlaneseq
  %v154 = vshrl.u32 %v153, 7
  %v155 = vsub.s32 3, %v154
  %v156 = vrot.slane %v112, %v155
  %v157 = vmul.f32 %v151, %v156
  %v158 = vadd.f32 %v148, %v157
  %159 = vset.pattern.permute.xlu0 4
  %160 = vperm.xlu0 %159, %v113
  %v161 = vpop.permute.xlu0 %160
  %v163 = vlaneseq
  %v164 = vshrl.u32 %v163, 7
  %v165 = vsub.s32 4, %v164
  %v166 = vrot.slane %v112, %v165
  %v167 = vmul.f32 %v161, %v166
  %v168 = vadd.f32 %v158, %v167
  %169 = vset.pattern.permute.xlu0 5
  %170 = vperm.xlu0 %169, %v113
  %v171 = vpop.permute.xlu0 %170
  %v173 = vlaneseq
  %v174 = vshrl.u32 %v173, 7
  %v175 = vsub.s32 5, %v174
  %v176 = vrot.slane %v112, %v175
  %v177 = vmul.f32 %v171, %v176
  %v178 = vadd.f32 %v168, %v177
  %179 = vset.pattern.permute.xlu0 6
  %180 = vperm.xlu0 %179, %v113
  %v181 = vpop.permute.xlu0 %180
  %v183 = vlaneseq
  %v184 = vshrl.u32 %v183, 7
  %v185 = vsub.s32 6, %v184
  %v186 = vrot.slane %v112, %v185
  %v187 = vmul.f32 %v181, %v186
  %v188 = vadd.f32 %v178, %v187
  %189 = vset.pattern.permute.xlu0 7
  %190 = vperm.xlu0 %189, %v113
  %v191 = vpop.permute.xlu0 %190
  %v193 = vlaneseq
  %v194 = vshrl.u32 %v193, 7
  %v195 = vsub.s32 7, %v194
  %v196 = vrot.slane %v112, %v195
  %v197 = vmul.f32 %v191, %v196
  %v198 = vadd.f32 %v188, %v197
  %v199 = vtanh.pop %v198
  %s200 = scalar_lea.vmem %s2, 8
  %v201 = vld [vmem:[%s200] sm:$0xff]
  %202 = vset.pattern.permute.xlu0 2
  %203 = vperm.xlu0 %202, %v24
  %v204 = vpop.permute.xlu0 %203
  %207 = vset.pattern.permute.xlu0 0
  %208 = vperm.xlu0 %207, %v201
  %v209 = vpop.permute.xlu0 %208
  %v211 = vlaneseq
  %v212 = vshrl.u32 %v211, 7
  %v213 = vsub.s32 0, %v212
  %v214 = vrot.slane %v199, %v213
  %v215 = vmul.f32 %v209, %v214
  %v216 = vadd.f32 %v204, %v215
  %217 = vset.pattern.permute.xlu0 1
  %218 = vperm.xlu0 %217, %v201
  %v219 = vpop.permute.xlu0 %218
  %v221 = vlaneseq
  %v222 = vshrl.u32 %v221, 7
  %v223 = vsub.s32 1, %v222
  %v224 = vrot.slane %v199, %v223
  %v225 = vmul.f32 %v219, %v224
  %v226 = vadd.f32 %v216, %v225
  %227 = vset.pattern.permute.xlu0 2
  %228 = vperm.xlu0 %227, %v201
  %v229 = vpop.permute.xlu0 %228
  %v231 = vlaneseq
  %v232 = vshrl.u32 %v231, 7
  %v233 = vsub.s32 2, %v232
  %v234 = vrot.slane %v199, %v233
  %v235 = vmul.f32 %v229, %v234
  %v236 = vadd.f32 %v226, %v235
  %237 = vset.pattern.permute.xlu0 3
  %238 = vperm.xlu0 %237, %v201
  %v239 = vpop.permute.xlu0 %238
  %v241 = vlaneseq
  %v242 = vshrl.u32 %v241, 7
  %v243 = vsub.s32 3, %v242
  %v244 = vrot.slane %v199, %v243
  %v245 = vmul.f32 %v239, %v244
  %v246 = vadd.f32 %v236, %v245
  %247 = vset.pattern.permute.xlu0 4
  %248 = vperm.xlu0 %247, %v201
  %v249 = vpop.permute.xlu0 %248
  %v251 = vlaneseq
  %v252 = vshrl.u32 %v251, 7
  %v253 = vsub.s32 4, %v252
  %v254 = vrot.slane %v199, %v253
  %v255 = vmul.f32 %v249, %v254
  %v256 = vadd.f32 %v246, %v255
  %257 = vset.pattern.permute.xlu0 5
  %258 = vperm.xlu0 %257, %v201
  %v259 = vpop.permute.xlu0 %258
  %v261 = vlaneseq
  %v262 = vshrl.u32 %v261, 7
  %v263 = vsub.s32 5, %v262
  %v264 = vrot.slane %v199, %v263
  %v265 = vmul.f32 %v259, %v264
  %v266 = vadd.f32 %v256, %v265
  %267 = vset.pattern.permute.xlu0 6
  %268 = vperm.xlu0 %267, %v201
  %v269 = vpop.permute.xlu0 %268
  %v271 = vlaneseq
  %v272 = vshrl.u32 %v271, 7
  %v273 = vsub.s32 6, %v272
  %v274 = vrot.slane %v199, %v273
  %v275 = vmul.f32 %v269, %v274
  %v276 = vadd.f32 %v266, %v275
  %277 = vset.pattern.permute.xlu0 7
  %278 = vperm.xlu0 %277, %v201
  %v279 = vpop.permute.xlu0 %278
  %v281 = vlaneseq
  %v282 = vshrl.u32 %v281, 7
  %v283 = vsub.s32 7, %v282
  %v284 = vrot.slane %v199, %v283
  %v285 = vmul.f32 %v279, %v284
  %v286 = vadd.f32 %v276, %v285
  %v287 = vtanh.pop %v286
  %v288 = vld [vmem:[%s3] sm:$0xff]
  %v289 = vld [vmem:[%s5] sm:$0xff]
  %291 = vset.pattern.permute.xlu0 0
  %292 = vperm.xlu0 %291, %v289
  %v293 = vpop.permute.xlu0 %292
  %296 = vset.pattern.permute.xlu0 0
  %297 = vperm.xlu0 %296, %v288
  %v298 = vpop.permute.xlu0 %297
  %v300 = vlaneseq
  %v301 = vshrl.u32 %v300, 7
  %v302 = vsub.s32 0, %v301
  %v303 = vrot.slane %v287, %v302
  %v304 = vmul.f32 %v298, %v303
  %v305 = vadd.f32 %v293, %v304
  %306 = vset.pattern.permute.xlu0 1
  %307 = vperm.xlu0 %306, %v288
  %v308 = vpop.permute.xlu0 %307
  %v310 = vlaneseq
  %v311 = vshrl.u32 %v310, 7
  %v312 = vsub.s32 1, %v311
  %v313 = vrot.slane %v287, %v312
  %v314 = vmul.f32 %v308, %v313
  %v315 = vadd.f32 %v305, %v314
  %316 = vset.pattern.permute.xlu0 2
  %317 = vperm.xlu0 %316, %v288
  %v318 = vpop.permute.xlu0 %317
  %v320 = vlaneseq
  %v321 = vshrl.u32 %v320, 7
  %v322 = vsub.s32 2, %v321
  %v323 = vrot.slane %v287, %v322
  %v324 = vmul.f32 %v318, %v323
  %v325 = vadd.f32 %v315, %v324
  %326 = vset.pattern.permute.xlu0 3
  %327 = vperm.xlu0 %326, %v288
  %v328 = vpop.permute.xlu0 %327
  %v330 = vlaneseq
  %v331 = vshrl.u32 %v330, 7
  %v332 = vsub.s32 3, %v331
  %v333 = vrot.slane %v287, %v332
  %v334 = vmul.f32 %v328, %v333
  %v335 = vadd.f32 %v325, %v334
  %336 = vset.pattern.permute.xlu0 4
  %337 = vperm.xlu0 %336, %v288
  %v338 = vpop.permute.xlu0 %337
  %v340 = vlaneseq
  %v341 = vshrl.u32 %v340, 7
  %v342 = vsub.s32 4, %v341
  %v343 = vrot.slane %v287, %v342
  %v344 = vmul.f32 %v338, %v343
  %v345 = vadd.f32 %v335, %v344
  %346 = vset.pattern.permute.xlu0 5
  %347 = vperm.xlu0 %346, %v288
  %v348 = vpop.permute.xlu0 %347
  %v350 = vlaneseq
  %v351 = vshrl.u32 %v350, 7
  %v352 = vsub.s32 5, %v351
  %v353 = vrot.slane %v287, %v352
  %v354 = vmul.f32 %v348, %v353
  %v355 = vadd.f32 %v345, %v354
  %356 = vset.pattern.permute.xlu0 6
  %357 = vperm.xlu0 %356, %v288
  %v358 = vpop.permute.xlu0 %357
  %v360 = vlaneseq
  %v361 = vshrl.u32 %v360, 7
  %v362 = vsub.s32 6, %v361
  %v363 = vrot.slane %v287, %v362
  %v364 = vmul.f32 %v358, %v363
  %v365 = vadd.f32 %v355, %v364
  %366 = vset.pattern.permute.xlu0 7
  %367 = vperm.xlu0 %366, %v288
  %v368 = vpop.permute.xlu0 %367
  %v370 = vlaneseq
  %v371 = vshrl.u32 %v370, 7
  %v372 = vsub.s32 7, %v371
  %v373 = vrot.slane %v287, %v372
  %v374 = vmul.f32 %v368, %v373
  %v375 = vadd.f32 %v365, %v374
  %v376 = vxor.u32 %v375, 2147483648
  %v377 = vmul.f32 %v376, 1.442695
  %v378 = vpow.pop %v377
  %v379 = vadd.f32 %v378, 1.0
  %v380 = vrcp.pop %v379
  %v381 = vmul.f32 1.0, %v380
  %382 = vst [vmem:[%s6] sm:$0xff] %v381
  // Predicated region
  $region26: #{mlp_forward.1} parent=0 // pred_check
    _
  $region27: #{mlp_forward.1} parent=0 // pred_check_branch
    %384 = sbr.rel (0) target = $region29
  $region28: #{mlp_forward.1} parent=0 // pred_region
    _
  $region29: #{mlp_forward.1} parent=0 // pred_fallthru
    _
  // Predicated region
  $region30: #{mlp_forward.1} parent=0 // pred_check
    _
  $region31: #{mlp_forward.1} parent=0 // pred_check_branch
    %386 = sbr.rel (0) target = $region33
  $region32: #{mlp_forward.1} parent=0 // pred_region
    _
  $region33: #{mlp_forward.1} parent=0 // pred_fallthru
    _

</llo_original>
